<compile_context>
chip_gen: v6e
topology: v6e:2x2x1
jax: 0.10.0
libtpu: 0.0.40
codegen_flags: <defaults>
</compile_context>

<pallas_src>
import numpy as np

import jax
import jax.numpy as jnp
from jax import lax
from jax.experimental import pallas as pl
from jax.experimental.pallas import tpu as pltpu


def _round_up(x, m):
    return ((x + m - 1) // m) * m


def _pairwise_mismatch_kernel(x_ref, xj_ref, out_ref):
    """Accumulate exact pairwise mismatch counts for one block of 8 comparand rows.

    x_ref  : (Bp, TILE_D) int32   - current D tile of every (padded) row
    xj_ref : (8,  TILE_D) int32   - current D tile of the 8 comparand rows (j block)
    out_ref: (Bp, 8)      float32 - out[i, jj] = #{d : x[i, d] != x[8*jb + jj, d]},
                                    accumulated across the D-tile grid axis.
    """
    @pl.when(pl.program_id(1) == 0)
    def _init():
        out_ref[...] = jnp.zeros_like(out_ref)

    # Comparand tile: one VMEM load per grid step; per-jj rows are value slices that
    # broadcast along sublanes inside the compare (the pl.ds(j, ., stride=0) VMEM
    # broadcast load is the alternative formulation).
    rows = xj_ref[...]                                        # (8, TILE_D)

    nb = x_ref.shape[0] // 8

    @pl.loop(0, nb)                                           # scf.for: bounded live set
    def _row_block(ib):
        i0 = pl.multiple_of(ib * 8, 8)
        xs = x_ref[pl.ds(i0, 8), :]                           # (8, TILE_D) streamed from VMEM
        for jj in range(8):                                   # static 8-way unroll
            row = rows[jj:jj + 1, :]                          # (1, TILE_D)
            neq = (xs != row).astype(jnp.float32)             # VPU compare + cast
            # Lane reduce on the XLU.  (An MXU dot with a ones(TILE_D, 1) operand was
            # considered, but that RHS is sublane-major and vreg-hostile.)
            cnt = jnp.sum(neq, axis=1, keepdims=True)         # (8, 1)
            out_ref[pl.ds(i0, 8), pl.ds(jj, 1)] += cnt
    # TODO(synk): restricting work to the lower triangle (i <= j) would halve the
    # compare cost but needs either an M=1 MXU dot or a small transpose in the
    # finalize; kept full-matrix for lowering safety.


def _finalize_kernel(neq_ref, codes_ref):
    """Turn the (Bp, Bp) mismatch-count matrix into first-appearance ids.

    neq_ref  : (Bp, Bp) float32 - neq[i, j] = #mismatching elements between rows i, j
    codes_ref: (1, Bp)  int32   - lane-major ids; codes[0, j] is valid for real rows j.
    """
    bp = neq_ref.shape[0]
    eq = neq_ref[...] == 0.0                                           # (Bp, Bp)
    ii = lax.broadcasted_iota(jnp.int32, (bp, bp), 0)                  # row index (sublanes)
    jj = lax.broadcasted_iota(jnp.int32, (bp, bp), 1)                  # col index (lanes)

    # First-occurrence index of each row's value, in both orientations (the matrix
    # is symmetric), so no transpose / M=1 matmul is needed.
    first_l = jnp.min(jnp.where(eq, ii, bp), axis=0, keepdims=True)    # (1, Bp)
    first_s = jnp.min(jnp.where(eq, jj, bp), axis=1, keepdims=True)    # (Bp, 1)

    ii_col = lax.broadcasted_iota(jnp.int32, (bp, 1), 0)
    is_new_s = (first_s == ii_col).astype(jnp.float32)                 # (Bp, 1)

    # codes[j] = #{ k : row k is a first occurrence and k <= first[j] } - 1
    contrib = is_new_s * (ii <= first_l).astype(jnp.float32)           # (Bp, Bp)
    codes = jnp.sum(contrib, axis=0, keepdims=True) - 1.0              # (1, Bp)
    codes_ref[...] = codes.astype(jnp.int32)


@jax.jit
def _encode_codes(xb):
    """xb: (b, *input_shape) -> (b,) int32 first-appearance ids (device array)."""
    b = xb.shape[0]
    flat = xb.reshape(b, -1)
    d = flat.shape[1]

    # Key on exact bit patterns so distinct float observations never collide after a
    # cast; integer dtypes are widened to int32.
    if jnp.issubdtype(flat.dtype, jnp.floating):
        # TODO(synk): bit-pattern keys treat -0.0 != 0.0 (a Python dict keyed on
        # values would not); >32-bit ints/floats would need two lanes per element.
        flat = lax.bitcast_convert_type(flat.astype(jnp.float32), jnp.int32)
    else:
        flat = flat.astype(jnp.int32)

    bp = max(8, _round_up(b, 8))
    dp = max(128, _round_up(d, 128))
    tile_d = next(t for t in (512, 384, 256, 128) if dp % t == 0)
    num_jb = bp // 8
    num_dt = dp // tile_d

    # Zero padding is fused into this jitted graph (no eager host-side copy).  Padded
    # rows sit at indices >= b and are provably inert for the first b codes.
    xp = jnp.pad(flat, ((0, bp - b), (0, dp - d)))

    # Double-buffered (Bp, TILE_D) + (8, TILE_D) input blocks and the lane-padded
    # (Bp, 128) output block.  Stays far below v7x's 64 MiB VMEM; raise the scoped
    # limit explicitly for v5e's 16 MiB default.
    need = 4 * (2 * bp * tile_d + 2 * 8 * tile_d + 2 * bp * 128)
    vmem_limit = int(min(64 << 20, max(32 << 20, 2 * need)))

    counts = pl.pallas_call(
        _pairwise_mismatch_kernel,
        out_shape=jax.ShapeDtypeStruct((num_jb, bp, 8), jnp.float32),
        grid=(num_jb, num_dt),
        in_specs=[
            pl.BlockSpec((bp, tile_d), lambda jb, dt: (0, dt)),    # every row, D tile dt
            pl.BlockSpec((8, tile_d), lambda jb, dt: (jb, dt)),    # the 8 comparand rows
        ],
        out_specs=pl.BlockSpec((None, bp, 8), lambda jb, dt: (jb, 0, 0)),
        compiler_params=pltpu.CompilerParams(
            dimension_semantics=("parallel", "arbitrary"),
            vmem_limit_bytes=vmem_limit,
        ),
    )(xp, xp)

    # (num_jb, Bp, 8) -> (Bp, Bp) pairwise mismatch matrix neq[i, j] (tiny transpose).
    neq = jnp.transpose(counts, (1, 0, 2)).reshape(bp, bp)

    codes_row = pl.pallas_call(
        _finalize_kernel,
        out_shape=jax.ShapeDtypeStruct((1, bp), jnp.int32),
        in_specs=[pl.BlockSpec(memory_space=pltpu.MemorySpace.VMEM)],
        out_specs=pl.BlockSpec(memory_space=pltpu.MemorySpace.VMEM),
    )(neq)

    return codes_row[0, :b]


class IntEncoderPallas:
    """Pallas re-implementation of training/encoders.py::IntEncoder.forward."""

    def __init__(self, input_shape, max_size=float("inf")):
        self.input_shape = tuple(input_shape)
        self.max_size = max_size
        # TODO(synk): the torch module keeps a persistent dict across calls; here each
        # call re-derives ids from an empty map (fresh-module semantics), so ids are
        # consistent within a single batch only.

    def __call__(self, x):
        x = jnp.asarray(x)
        if x.shape == self.input_shape:
            codes = _encode_codes(x[None])
            self._check_max_size(codes)
            # Original encode_single returns a Python int; return the 0-d device
            # scalar to avoid forcing a device->host sync on every call.
            return codes[0]
        elif x.shape[1:] == self.input_shape:
            codes = _encode_codes(x)
            self._check_max_size(codes)
            return codes
        else:
            raise Exception(f"Input doesn't match shape {self.input_shape}")

    def _check_max_size(self, codes):
        if self.max_size < float("inf"):
            # TODO(synk): the torch module raises at the first overflowing insertion;
            # here the check (and its single host sync) happens after the batch and
            # only when max_size is finite.
            n_unique = int(jnp.max(codes)) + 1
            if n_unique > self.max_size:
                raise Exception("Encoder ran out of unique mappings")


if __name__ == "__main__":
    key = jax.random.PRNGKey(0)
    input_shape = (4, 16, 16)              # small NCHW-style observation (C, H, W)
    base = jax.random.randint(key, (3,) + input_shape, 0, 5, dtype=jnp.int32)

    # Batch with duplicates: [a, b, a, c, b, a] -> ids [0, 1, 0, 2, 1, 0]
    xb = jnp.stack([base[0], base[1], base[0], base[2], base[1], base[0]])

    enc = IntEncoderPallas(input_shape)
    codes = jax.block_until_ready(enc(xb))

    # Pure-Python reference (dict-based, identical to the torch semantics).
    ref_map, expected = {}, []
    for row in np.asarray(xb).reshape(xb.shape[0], -1):
        k_ = tuple(row.tolist())
        if k_ not in ref_map:
            ref_map[k_] = len(ref_map)
        expected.append(ref_map[k_])
    got = [int(v) for v in np.asarray(codes)]
    assert got == expected, (got, expected)

    single = jax.block_until_ready(enc(base[0]))   # encode_single path (fresh map -> 0)
    assert int(single) == 0, single

    print("KERNEL_OK")
</pallas_src>

<mosaic_0001>
module attributes {stable_mosaic.version = 11 : i64} {
  func.func @_finalize_kernel(%arg0: memref<8x8xf32, #tpu.memory_space<vmem>>, %arg1: memref<1x8xi32, #tpu.memory_space<vmem>>) attributes {dimension_semantics = [], scalar_prefetch = 0 : i64, scratch_operands = 0 : i64, tpu.core_type = #tpu.core_type<tc>} {
    %c0 = arith.constant 0 : index
    %c0_0 = arith.constant 0 : index
    %0 = vector.load %arg0[%c0, %c0_0] : memref<8x8xf32, #tpu.memory_space<vmem>>, vector<8x8xf32>
    %cst = arith.constant 0.000000e+00 : f32
    %1 = vector.broadcast %cst : f32 to vector<8x8xf32>
    %2 = arith.cmpf oeq, %0, %1 : vector<8x8xf32>
    %3 = tpu.iota {dimensions = array<i32: 0>} : vector<8x8xi32>
    %4 = tpu.iota {dimensions = array<i32: 1>} : vector<8x8xi32>
    %c8_i32 = arith.constant 8 : i32
    %5 = vector.broadcast %c8_i32 : i32 to vector<8x8xi32>
    %6 = arith.select %2, %3, %5 : vector<8x8xi1>, vector<8x8xi32>
    %cst_1 = arith.constant dense<2147483647> : vector<8xi32>
    %7 = vector.multi_reduction <minsi>, %6, %cst_1 [0] : vector<8x8xi32> to vector<8xi32>
    %8 = vector.shape_cast %7 : vector<8xi32> to vector<1x8xi32>
    %c8_i32_2 = arith.constant 8 : i32
    %9 = vector.broadcast %c8_i32_2 : i32 to vector<8x8xi32>
    %10 = arith.select %2, %4, %9 : vector<8x8xi1>, vector<8x8xi32>
    %cst_3 = arith.constant dense<2147483647> : vector<8xi32>
    %11 = vector.multi_reduction <minsi>, %10, %cst_3 [1] : vector<8x8xi32> to vector<8xi32>
    %12 = vector.shape_cast %11 : vector<8xi32> to vector<8x1xi32>
    %13 = tpu.iota {dimensions = array<i32: 0>} : vector<8x1xi32>
    %14 = arith.cmpi eq, %12, %13 : vector<8x1xi32>
    %15 = arith.extui %14 : vector<8x1xi1> to vector<8x1xi32>
    %16 = arith.sitofp %15 : vector<8x1xi32> to vector<8x1xf32>
    %17 = vector.broadcast %8 : vector<1x8xi32> to vector<8x8xi32>
    %18 = arith.cmpi sle, %3, %17 : vector<8x8xi32>
    %19 = arith.extui %18 : vector<8x8xi1> to vector<8x8xi32>
    %20 = arith.sitofp %19 : vector<8x8xi32> to vector<8x8xf32>
    %21 = vector.broadcast %16 : vector<8x1xf32> to vector<8x8xf32>
    %22 = arith.mulf %21, %20 : vector<8x8xf32>
    %cst_4 = arith.constant dense<0.000000e+00> : vector<8xf32>
    %23 = vector.multi_reduction <add>, %22, %cst_4 [0] : vector<8x8xf32> to vector<8xf32>
    %24 = vector.shape_cast %23 : vector<8xf32> to vector<1x8xf32>
    %cst_5 = arith.constant 1.000000e+00 : f32
    %25 = vector.broadcast %cst_5 : f32 to vector<1x8xf32>
    %26 = arith.subf %24, %25 : vector<1x8xf32>
    %27 = arith.fptosi %26 : vector<1x8xf32> to vector<1x8xi32>
    %c0_6 = arith.constant 0 : index
    %c0_7 = arith.constant 0 : index
    %28 = vector.load %arg1[%c0_6, %c0_7] : memref<1x8xi32, #tpu.memory_space<vmem>>, vector<1x8xi32>
    tpu.vector_store %arg1[%c0_6, %c0_7], %27 {strides = array<i32>} : memref<1x8xi32, #tpu.memory_space<vmem>>, vector<1x8xi32>,
    return
  }
}

module attributes {stable_mosaic.version = 11 : i64} {
  func.func @_pairwise_mismatch_kernel(%arg0: i32, %arg1: i32, %arg2: memref<8x512xi32, #tpu.memory_space<vmem>>, %arg3: memref<8x512xi32, #tpu.memory_space<vmem>>, %arg4: memref<1x8x8xf32, #tpu.memory_space<vmem>>) attributes {dimension_semantics = [#tpu.dimension_semantics<parallel>, #tpu.dimension_semantics<arbitrary>], iteration_bounds = array<i64: 1, 2>, scalar_prefetch = 0 : i64, scratch_operands = 0 : i64, tpu.core_type = #tpu.core_type<tc>, window_params = [{transform_indices = @transform_0, window_bounds = array<i64: 8, 512>}, {transform_indices = @transform_1, window_bounds = array<i64: 8, 512>}, {transform_indices = @transform_2, window_bounds = array<i64: 1, 8, 8>}]} {
    %c0_i32 = arith.constant 0 : i32
    %0 = arith.cmpi eq, %arg1, %c0_i32 : i32
    %1 = arith.extui %0 : i1 to i32
    %c0_i32_0 = arith.constant 0 : i32
    %2 = arith.cmpi ne, %1, %c0_i32_0 : i32
    scf.if %2 {
      %cst_38 = arith.constant 0.000000e+00 : f32
      %130 = vector.broadcast %cst_38 : f32 to vector<8x8xf32>
      %c0_39 = arith.constant 0 : index
      %c0_40 = arith.constant 0 : index
      %c0_41 = arith.constant 0 : index
      %131 = vector.load %arg4[%c0_39, %c0_40, %c0_41] : memref<1x8x8xf32, #tpu.memory_space<vmem>>, vector<1x8x8xf32>
      %132 = vector.shape_cast %131 : vector<1x8x8xf32> to vector<8x8xf32>
      %133 = vector.shape_cast %130 : vector<8x8xf32> to vector<1x8x8xf32>
      tpu.vector_store %arg4[%c0_39, %c0_40, %c0_41], %133 {strides = array<i32>} : memref<1x8x8xf32, #tpu.memory_space<vmem>>, vector<1x8x8xf32>,
    } else {
    }
    %c0 = arith.constant 0 : index
    %c0_1 = arith.constant 0 : index
    %3 = vector.load %arg3[%c0, %c0_1] : memref<8x512xi32, #tpu.memory_space<vmem>>, vector<8x512xi32>
    %c0_i32_2 = arith.constant 0 : i32
    %c1_i32 = arith.constant 1 : i32
    %4 = arith.muli %c0_i32_2, %c1_i32 : i32
    %c0_i32_3 = arith.constant 0 : i32
    %5 = arith.addi %c0_i32_3, %4 : i32
    %c8_i32 = arith.constant 8 : i32
    %6 = arith.muli %5, %c8_i32 : i32
    %7 = tpu.assume_multiple %6, 8 : i32
    %8 = arith.index_cast %7 : i32 to index
    %c0_4 = arith.constant 0 : index
    %9 = vector.load %arg2[%8, %c0_4] : memref<8x512xi32, #tpu.memory_space<vmem>>, vector<8x512xi32>
    %10 = vector.extract_strided_slice %3 {offsets = [0, 0], sizes = [1, 512], strides = [1, 1]} : vector<8x512xi32> to vector<1x512xi32>
    %11 = vector.broadcast %10 : vector<1x512xi32> to vector<8x512xi32>
    %12 = arith.cmpi ne, %9, %11 : vector<8x512xi32>
    %13 = arith.extui %12 : vector<8x512xi1> to vector<8x512xi32>
    %14 = arith.sitofp %13 : vector<8x512xi32> to vector<8x512xf32>
    %cst = arith.constant dense<0.000000e+00> : vector<8xf32>
    %15 = vector.multi_reduction <add>, %14, %cst [1] : vector<8x512xf32> to vector<8xf32>
    %16 = vector.shape_cast %15 : vector<8xf32> to vector<8x1xf32>
    %c0_5 = arith.constant 0 : index
    %17 = arith.index_cast %7 : i32 to index
    %c0_6 = arith.constant 0 : index
    %18 = vector.load %arg4[%c0_5, %17, %c0_6] : memref<1x8x8xf32, #tpu.memory_space<vmem>>, vector<1x8x1xf32>
    %19 = vector.shape_cast %18 : vector<1x8x1xf32> to vector<8x1xf32>
    %20 = arith.addf %19, %16 : vector<8x1xf32>
    %c0_7 = arith.constant 0 : index
    %21 = arith.index_cast %7 : i32 to index
    %c0_8 = arith.constant 0 : index
    %22 = vector.load %arg4[%c0_7, %21, %c0_8] : memref<1x8x8xf32, #tpu.memory_space<vmem>>, vector<1x8x1xf32>
    %23 = vector.shape_cast %22 : vector<1x8x1xf32> to vector<8x1xf32>
    %24 = vector.shape_cast %20 : vector<8x1xf32> to vector<1x8x1xf32>
    tpu.vector_store %arg4[%c0_7, %21, %c0_8], %24 {strides = array<i32>} : memref<1x8x8xf32, #tpu.memory_space<vmem>>, vector<1x8x1xf32>,
    %25 = vector.extract_strided_slice %3 {offsets = [1, 0], sizes = [1, 512], strides = [1, 1]} : vector<8x512xi32> to vector<1x512xi32>
    %26 = vector.broadcast %25 : vector<1x512xi32> to vector<8x512xi32>
    %27 = arith.cmpi ne, %9, %26 : vector<8x512xi32>
    %28 = arith.extui %27 : vector<8x512xi1> to vector<8x512xi32>
    %29 = arith.sitofp %28 : vector<8x512xi32> to vector<8x512xf32>
    %cst_9 = arith.constant dense<0.000000e+00> : vector<8xf32>
    %30 = vector.multi_reduction <add>, %29, %cst_9 [1] : vector<8x512xf32> to vector<8xf32>
    %31 = vector.shape_cast %30 : vector<8xf32> to vector<8x1xf32>
    %c0_10 = arith.constant 0 : index
    %32 = arith.index_cast %7 : i32 to index
    %c1 = arith.constant 1 : index
    %33 = vector.load %arg4[%c0_10, %32, %c1] : memref<1x8x8xf32, #tpu.memory_space<vmem>>, vector<1x8x1xf32>
    %34 = vector.shape_cast %33 : vector<1x8x1xf32> to vector<8x1xf32>
    %35 = arith.addf %34, %31 : vector<8x1xf32>
    %c0_11 = arith.constant 0 : index
    %36 = arith.index_cast %7 : i32 to index
    %c1_12 = arith.constant 1 : index
    %37 = vector.load %arg4[%c0_11, %36, %c1_12] : memref<1x8x8xf32, #tpu.memory_space<vmem>>, vector<1x8x1xf32>
    %38 = vector.shape_cast %37 : vector<1x8x1xf32> to vector<8x1xf32>
    %39 = vector.shape_cast %35 : vector<8x1xf32> to vector<1x8x1xf32>
    tpu.vector_store %arg4[%c0_11, %36, %c1_12], %39 {strides = array<i32>} : memref<1x8x8xf32, #tpu.memory_space<vmem>>, vector<1x8x1xf32>,
    %40 = vector.extract_strided_slice %3 {offsets = [2, 0], sizes = [1, 512], strides = [1, 1]} : vector<8x512xi32> to vector<1x512xi32>
    %41 = vector.broadcast %40 : vector<1x512xi32> to vector<8x512xi32>
    %42 = arith.cmpi ne, %9, %41 : vector<8x512xi32>
    %43 = arith.extui %42 : vector<8x512xi1> to vector<8x512xi32>
    %44 = arith.sitofp %43 : vector<8x512xi32> to vector<8x512xf32>
    %cst_13 = arith.constant dense<0.000000e+00> : vector<8xf32>
    %45 = vector.multi_reduction <add>, %44, %cst_13 [1] : vector<8x512xf32> to vector<8xf32>
    %46 = vector.shape_cast %45 : vector<8xf32> to vector<8x1xf32>
    %c0_14 = arith.constant 0 : index
    %47 = arith.index_cast %7 : i32 to index
    %c2 = arith.constant 2 : index
    %48 = vector.load %arg4[%c0_14, %47, %c2] : memref<1x8x8xf32, #tpu.memory_space<vmem>>, vector<1x8x1xf32>
    %49 = vector.shape_cast %48 : vector<1x8x1xf32> to vector<8x1xf32>
    %50 = arith.addf %49, %46 : vector<8x1xf32>
    %c0_15 = arith.constant 0 : index
    %51 = arith.index_cast %7 : i32 to index
    %c2_16 = arith.constant 2 : index
    %52 = vector.load %arg4[%c0_15, %51, %c2_16] : memref<1x8x8xf32, #tpu.memory_space<vmem>>, vector<1x8x1xf32>
    %53 = vector.shape_cast %52 : vector<1x8x1xf32> to vector<8x1xf32>
    %54 = vector.shape_cast %50 : vector<8x1xf32> to vector<1x8x1xf32>
    tpu.vector_store %arg4[%c0_15, %51, %c2_16], %54 {strides = array<i32>} : memref<1x8x8xf32, #tpu.memory_space<vmem>>, vector<1x8x1xf32>,
    %55 = vector.extract_strided_slice %3 {offsets = [3, 0], sizes = [1, 512], strides = [1, 1]} : vector<8x512xi32> to vector<1x512xi32>
    %56 = vector.broadcast %55 : vector<1x512xi32> to vector<8x512xi32>
    %57 = arith.cmpi ne, %9, %56 : vector<8x512xi32>
    %58 = arith.extui %57 : vector<8x512xi1> to vector<8x512xi32>
    %59 = arith.sitofp %58 : vector<8x512xi32> to vector<8x512xf32>
    %cst_17 = arith.constant dense<0.000000e+00> : vector<8xf32>
    %60 = vector.multi_reduction <add>, %59, %cst_17 [1] : vector<8x512xf32> to vector<8xf32>
    %61 = vector.shape_cast %60 : vector<8xf32> to vector<8x1xf32>
    %c0_18 = arith.constant 0 : index
    %62 = arith.index_cast %7 : i32 to index
    %c3 = arith.constant 3 : index
    %63 = vector.load %arg4[%c0_18, %62, %c3] : memref<1x8x8xf32, #tpu.memory_space<vmem>>, vector<1x8x1xf32>
    %64 = vector.shape_cast %63 : vector<1x8x1xf32> to vector<8x1xf32>
    %65 = arith.addf %64, %61 : vector<8x1xf32>
    %c0_19 = arith.constant 0 : index
    %66 = arith.index_cast %7 : i32 to index
    %c3_20 = arith.constant 3 : index
    %67 = vector.load %arg4[%c0_19, %66, %c3_20] : memref<1x8x8xf32, #tpu.memory_space<vmem>>, vector<1x8x1xf32>
    %68 = vector.shape_cast %67 : vector<1x8x1xf32> to vector<8x1xf32>
    %69 = vector.shape_cast %65 : vector<8x1xf32> to vector<1x8x1xf32>
    tpu.vector_store %arg4[%c0_19, %66, %c3_20], %69 {strides = array<i32>} : memref<1x8x8xf32, #tpu.memory_space<vmem>>, vector<1x8x1xf32>,
    %70 = vector.extract_strided_slice %3 {offsets = [4, 0], sizes = [1, 512], strides = [1, 1]} : vector<8x512xi32> to vector<1x512xi32>
    %71 = vector.broadcast %70 : vector<1x512xi32> to vector<8x512xi32>
    %72 = arith.cmpi ne, %9, %71 : vector<8x512xi32>
    %73 = arith.extui %72 : vector<8x512xi1> to vector<8x512xi32>
    %74 = arith.sitofp %73 : vector<8x512xi32> to vector<8x512xf32>
    %cst_21 = arith.constant dense<0.000000e+00> : vector<8xf32>
    %75 = vector.multi_reduction <add>, %74, %cst_21 [1] : vector<8x512xf32> to vector<8xf32>
    %76 = vector.shape_cast %75 : vector<8xf32> to vector<8x1xf32>
    %c0_22 = arith.constant 0 : index
    %77 = arith.index_cast %7 : i32 to index
    %c4 = arith.constant 4 : index
    %78 = vector.load %arg4[%c0_22, %77, %c4] : memref<1x8x8xf32, #tpu.memory_space<vmem>>, vector<1x8x1xf32>
    %79 = vector.shape_cast %78 : vector<1x8x1xf32> to vector<8x1xf32>
    %80 = arith.addf %79, %76 : vector<8x1xf32>
    %c0_23 = arith.constant 0 : index
    %81 = arith.index_cast %7 : i32 to index
    %c4_24 = arith.constant 4 : index
    %82 = vector.load %arg4[%c0_23, %81, %c4_24] : memref<1x8x8xf32, #tpu.memory_space<vmem>>, vector<1x8x1xf32>
    %83 = vector.shape_cast %82 : vector<1x8x1xf32> to vector<8x1xf32>
    %84 = vector.shape_cast %80 : vector<8x1xf32> to vector<1x8x1xf32>
    tpu.vector_store %arg4[%c0_23, %81, %c4_24], %84 {strides = array<i32>} : memref<1x8x8xf32, #tpu.memory_space<vmem>>, vector<1x8x1xf32>,
    %85 = vector.extract_strided_slice %3 {offsets = [5, 0], sizes = [1, 512], strides = [1, 1]} : vector<8x512xi32> to vector<1x512xi32>
    %86 = vector.broadcast %85 : vector<1x512xi32> to vector<8x512xi32>
    %87 = arith.cmpi ne, %9, %86 : vector<8x512xi32>
    %88 = arith.extui %87 : vector<8x512xi1> to vector<8x512xi32>
    %89 = arith.sitofp %88 : vector<8x512xi32> to vector<8x512xf32>
    %cst_25 = arith.constant dense<0.000000e+00> : vector<8xf32>
    %90 = vector.multi_reduction <add>, %89, %cst_25 [1] : vector<8x512xf32> to vector<8xf32>
    %91 = vector.shape_cast %90 : vector<8xf32> to vector<8x1xf32>
    %c0_26 = arith.constant 0 : index
    %92 = arith.index_cast %7 : i32 to index
    %c5 = arith.constant 5 : index
    %93 = vector.load %arg4[%c0_26, %92, %c5] : memref<1x8x8xf32, #tpu.memory_space<vmem>>, vector<1x8x1xf32>
    %94 = vector.shape_cast %93 : vector<1x8x1xf32> to vector<8x1xf32>
    %95 = arith.addf %94, %91 : vector<8x1xf32>
    %c0_27 = arith.constant 0 : index
    %96 = arith.index_cast %7 : i32 to index
    %c5_28 = arith.constant 5 : index
    %97 = vector.load %arg4[%c0_27, %96, %c5_28] : memref<1x8x8xf32, #tpu.memory_space<vmem>>, vector<1x8x1xf32>
    %98 = vector.shape_cast %97 : vector<1x8x1xf32> to vector<8x1xf32>
    %99 = vector.shape_cast %95 : vector<8x1xf32> to vector<1x8x1xf32>
    tpu.vector_store %arg4[%c0_27, %96, %c5_28], %99 {strides = array<i32>} : memref<1x8x8xf32, #tpu.memory_space<vmem>>, vector<1x8x1xf32>,
    %100 = vector.extract_strided_slice %3 {offsets = [6, 0], sizes = [1, 512], strides = [1, 1]} : vector<8x512xi32> to vector<1x512xi32>
    %101 = vector.broadcast %100 : vector<1x512xi32> to vector<8x512xi32>
    %102 = arith.cmpi ne, %9, %101 : vector<8x512xi32>
    %103 = arith.extui %102 : vector<8x512xi1> to vector<8x512xi32>
    %104 = arith.sitofp %103 : vector<8x512xi32> to vector<8x512xf32>
    %cst_29 = arith.constant dense<0.000000e+00> : vector<8xf32>
    %105 = vector.multi_reduction <add>, %104, %cst_29 [1] : vector<8x512xf32> to vector<8xf32>
    %106 = vector.shape_cast %105 : vector<8xf32> to vector<8x1xf32>
    %c0_30 = arith.constant 0 : index
    %107 = arith.index_cast %7 : i32 to index
    %c6 = arith.constant 6 : index
    %108 = vector.load %arg4[%c0_30, %107, %c6] : memref<1x8x8xf32, #tpu.memory_space<vmem>>, vector<1x8x1xf32>
    %109 = vector.shape_cast %108 : vector<1x8x1xf32> to vector<8x1xf32>
    %110 = arith.addf %109, %106 : vector<8x1xf32>
    %c0_31 = arith.constant 0 : index
    %111 = arith.index_cast %7 : i32 to index
    %c6_32 = arith.constant 6 : index
    %112 = vector.load %arg4[%c0_31, %111, %c6_32] : memref<1x8x8xf32, #tpu.memory_space<vmem>>, vector<1x8x1xf32>
    %113 = vector.shape_cast %112 : vector<1x8x1xf32> to vector<8x1xf32>
    %114 = vector.shape_cast %110 : vector<8x1xf32> to vector<1x8x1xf32>
    tpu.vector_store %arg4[%c0_31, %111, %c6_32], %114 {strides = array<i32>} : memref<1x8x8xf32, #tpu.memory_space<vmem>>, vector<1x8x1xf32>,
    %115 = vector.extract_strided_slice %3 {offsets = [7, 0], sizes = [1, 512], strides = [1, 1]} : vector<8x512xi32> to vector<1x512xi32>
    %116 = vector.broadcast %115 : vector<1x512xi32> to vector<8x512xi32>
    %117 = arith.cmpi ne, %9, %116 : vector<8x512xi32>
    %118 = arith.extui %117 : vector<8x512xi1> to vector<8x512xi32>
    %119 = arith.sitofp %118 : vector<8x512xi32> to vector<8x512xf32>
    %cst_33 = arith.constant dense<0.000000e+00> : vector<8xf32>
    %120 = vector.multi_reduction <add>, %119, %cst_33 [1] : vector<8x512xf32> to vector<8xf32>
    %121 = vector.shape_cast %120 : vector<8xf32> to vector<8x1xf32>
    %c0_34 = arith.constant 0 : index
    %122 = arith.index_cast %7 : i32 to index
    %c7 = arith.constant 7 : index
    %123 = vector.load %arg4[%c0_34, %122, %c7] : memref<1x8x8xf32, #tpu.memory_space<vmem>>, vector<1x8x1xf32>
    %124 = vector.shape_cast %123 : vector<1x8x1xf32> to vector<8x1xf32>
    %125 = arith.addf %124, %121 : vector<8x1xf32>
    %c0_35 = arith.constant 0 : index
    %126 = arith.index_cast %7 : i32 to index
    %c7_36 = arith.constant 7 : index
    %127 = vector.load %arg4[%c0_35, %126, %c7_36] : memref<1x8x8xf32, #tpu.memory_space<vmem>>, vector<1x8x1xf32>
    %128 = vector.shape_cast %127 : vector<1x8x1xf32> to vector<8x1xf32>
    %129 = vector.shape_cast %125 : vector<8x1xf32> to vector<1x8x1xf32>
    tpu.vector_store %arg4[%c0_35, %126, %c7_36], %129 {strides = array<i32>} : memref<1x8x8xf32, #tpu.memory_space<vmem>>, vector<1x8x1xf32>,
    %c1_i32_37 = arith.constant 1 : i32
    return
  }
  func.func @transform_0(%arg0: i32, %arg1: i32) -> (i32, i32) {
    %c0_i32 = arith.constant 0 : i32
    %c0_i32_0 = arith.constant 0 : i32
    return %c0_i32, %arg1 : i32, i32
  }
  func.func @transform_1(%arg0: i32, %arg1: i32) -> (i32, i32) {
    %c0_i32 = arith.constant 0 : i32
    return %arg0, %arg1 : i32, i32
  }
  func.func @transform_2(%arg0: i32, %arg1: i32) -> (i32, i32, i32) {
    %c0_i32 = arith.constant 0 : i32
    %c0_i32_0 = arith.constant 0 : i32
    %c0_i32_1 = arith.constant 0 : i32
    return %arg0, %c0_i32, %c0_i32_0 : i32, i32, i32
  }
}

</mosaic_0001>

<llo_original>
// kernel: _encode_codes.3
$region0: #{_encode_codes.3}
  #allocation0 [shape = 'u32[]', space=smem, size = 0x4, offset = 0x4, fixed_abs, tag = 'smem constant byte address 0x4 - core index']
  #allocation1 [shape = 'u32[144,128]{1,0:T(1,128)}', space=vmem, size = 0x12000, scoped, tag = 'internal scratch']
  %s0 = inlined_call_operand.vmem [shape: f32[8,8], index: 0, kind: input, shape index: {}]
  %s1 = inlined_call_operand.vmem [shape: s32[1,8], index: 1, kind: output, shape index: {}]
  %s2 = sld [smem:[#allocation0]]
  $region14: #{_encode_codes.3} parent=0
    _
  %s4 = ssub.s32 1, %s2
  %s5 = scalar_select 0, %s4, %s2
  // Predicated region
  $region2: #{_encode_codes.3} parent=0 // pred_check
    _
  $region3: #{_encode_codes.3} parent=0 // pred_check_branch
    %7 = sbr.rel (0) target = $region5
  $region4: #{_encode_codes.3} parent=0 // pred_region
    _
  $region5: #{_encode_codes.3} parent=0 // pred_fallthru
    _
  %v8 = vld [vmem:[%s0] sm:$0xff]
  %vm9 = vcmp.eq.f32.partialorder %v8, 0.0
  %v10 = vlaneseq
  %v11 = vshrl.u32 %v10, 7
  %v12 = vlaneseq
  %v13 = vand.u32 %v12, 127
  %v14 = vsel %vm9, %v11, 8
  %vm15 = vcmask 64512
  %v16 = vsel %vm15, %v14, 2147483647
  %v17 = vrot.slane %v16, 4
  %vm18 = vcmp.lt.s32.totalorder %v16, %v17
  %v19 = vsel %vm18, %v16, %v17
  %v20 = vrot.slane %v19, 2
  %vm21 = vcmp.lt.s32.totalorder %v19, %v20
  %v22 = vsel %vm21, %v19, %v20
  %v23 = vrot.slane %v22, 1
  %vm24 = vcmp.lt.s32.totalorder %v22, %v23
  %v25 = vsel %vm24, %v22, %v23
  %v26 = vsel %vm9, %v13, 8
  %v27 = vsel %vm15, %v26, 2147483647
  %v28 = vand.u32 %v27, 65535
  %v29 = vshra.s32 %v27, 16
  %v30 = vcvt.s32.f32 %v28
  %v31 = vcvt.s32.f32 %v29
  %32 = vmin.xlane.f32.xlu0 %v31
  %v33 = vpop.xlane.xlu0 %32
  %vm34 = vcmp.eq.f32.partialorder %v31, %v33
  %v35 = vsel %vm34, %v30, inf
  %36 = vmin.xlane.f32.xlu0 %v35
  %v37 = vpop.xlane.xlu0 %36
  %v38 = vcvt.f32.s32 %v37
  %v39 = vcvt.f32.s32 %v33
  %v40 = vshll.u32 %v39, 16
  %v41 = vadd.s32 %v40, %v38
  %vm42 = vcmp.eq.s32.totalorder %v41, %v11
  %v43 = vsel %vm42, 1, 0
  %v44 = vcvt.s32.f32 %v43
  %vm45 = vcmp.le.s32.totalorder %v11, %v25
  %v46 = vsel %vm45, 1, 0
  %v47 = vcvt.s32.f32 %v46
  %v48 = vmul.f32 %v44, %v47
  %v49 = vsel %vm15, %v48, 0.0
  %v50 = vrot.slane %v49, 4
  %v51 = vadd.f32 %v49, %v50
  %v52 = vrot.slane %v51, 2
  %v53 = vadd.f32 %v51, %v52
  %v54 = vrot.slane %v53, 1
  %v55 = vadd.f32 %v53, %v54
  %v56 = vsub.f32 %v55, 1.0
  %v57 = vcvt.f32.s32.to.zero.pseudo %v56
  %vm58 = vcmask 57344
  %59 = vst.msk [vmem:[%s1] sm:$0x1] %vm58, %v57
  // Predicated region
  $region6: #{_encode_codes.3} parent=0 // pred_check
    _
  $region7: #{_encode_codes.3} parent=0 // pred_check_branch
    %61 = sbr.rel (0) target = $region9
  $region8: #{_encode_codes.3} parent=0 // pred_region
    _
  $region9: #{_encode_codes.3} parent=0 // pred_fallthru
    _
  // Predicated region
  $region10: #{_encode_codes.3} parent=0 // pred_check
    _
  $region11: #{_encode_codes.3} parent=0 // pred_check_branch
    %63 = sbr.rel (0) target = $region13
  $region12: #{_encode_codes.3} parent=0 // pred_region
    _
  $region13: #{_encode_codes.3} parent=0 // pred_fallthru
    _

// kernel: _encode_codes.2
$region0: #{_encode_codes.2}
  #allocation0 [shape = 'u32[]', space=smem, size = 0x4, offset = 0x4, fixed_abs, tag = 'smem constant byte address 0x4 - core index']
  #allocation1 [shape = 'u32[144,128]{1,0:T(1,128)}', space=vmem, size = 0x12000, scoped, tag = 'internal scratch']
  %s0 = inlined_call_operand.vmem [shape: s32[8,1024], index: 0, kind: input, shape index: {}, may-alias: {0,1}]
  %s1 = inlined_call_operand.vmem [shape: s32[8,1024], index: 1, kind: input, shape index: {}, may-alias: {0,1}]
  %s2 = inlined_call_operand.vmem [shape: f32[1,8,8], index: 2, kind: output, shape index: {}]
  %s3 = sld [smem:[#allocation0]]
  $region45: #{_encode_codes.2} parent=0
    _
  %s5 = ssub.s32 1, %s3
  %s6 = scalar_select 0, %s5, %s3
  loop: start=0, step=1, limit=4
  $region2: #{_encode_codes.2} parent=0 // loop_pre_header
    _
  $region3: #{_encode_codes.2} parent=0 // loop_header
    %s8 = sphi 0, %s12
    %p9 = scmp.ge.s32.totalorder %s8, 4
    %s15 = sphi 0, %s27
    %s16 = sphi 0, %s23
    %s17 = sphi 0, %s15
    %s18 = sphi 0, %s16
    %s19 = sphi 0, %s17
    %s20 = sphi 0, %s18
    %s30 = sphi 0, %s32
    %s33 = sphi 0, %s30
    %s34 = sphi 0, %s33
    %s50 = sphi 0, %s34
    %s58 = sphi 0, %s60
    %s61 = sphi 0, %s58
    %s62 = sphi 0, %s61
    %s78 = sphi 0, %s62
    %s84 = sphi 0, %s86
    %s87 = sphi 0, %s84
    %s88 = sphi 0, %s87
    %s104 = sphi 0, %s88
  $region4: #{_encode_codes.2} parent=0 // loop_header_branch
    %11 = sbr.rel (%p9) target = $region8
  $region5: #{_encode_codes.2} parent=0 // loop_body
    %s13 = ssub.s32 %s8, 1
    %s14 = ssub.s32 %s8, 2
    %s21 = sadd.s32 1, %s16
    %p22 = scmp.ge.s32.totalorder %s21, 2
    %s23 = scalar_select %p22, 0, %s21
    %s24 = sadd.s32 1, %s15
    %s25 = scalar_select %p22, %s24, %s15
    %p26 = scmp.ge.s32.totalorder %s25, 1
    %s27 = scalar_select %p26, 0, %s25
    %s28 = ssub.s32 %s16, %s23
    %p29 = scmp.eq.s32.totalorder %s28, 0
    %s31 = sadd.s32 %s30, 1
    %s32 = scalar_select %p29, %s30, %s31
    %p35 = pneg %p29
    %p36 = scmp.eq.s32.totalorder %s8, 1
    %p37 = por %p35, %p36
    %p38 = scmp.ne.s32.totalorder %s30, %s33
    %p39 = scmp.eq.s32.totalorder %s8, 0
    %p40 = por %p38, %p39
    %p41 = scmp.ne.s32.totalorder %s30, %s33
    %p42 = scmp.eq.s32.totalorder %s13, 1
    %p43 = por %p41, %p42
    %p44 = scmp.ne.s32.totalorder %s33, %s34
    %p45 = scmp.eq.s32.totalorder %s13, 0
    %p46 = por %p44, %p45
    %p47 = scmp.ne.s32.totalorder %s33, %s34
    %p48 = scmp.eq.s32.totalorder %s14, 1
    %p49 = por %p47, %p48
    %p51 = scmp.ne.s32.totalorder %s34, %s50
    %p52 = scmp.eq.s32.totalorder %s14, 0
    %p53 = por %p51, %p52
    %s54 = ssub.s32 %s15, %s27
    %s55 = ssub.s32 %s16, %s23
    %s56 = sor.u32 %s54, %s55
    %p57 = scmp.eq.s32.totalorder %s56, 0
    %s59 = sadd.s32 %s58, 1
    %s60 = scalar_select %p57, %s58, %s59
    %p63 = pneg %p57
    %p64 = scmp.eq.s32.totalorder %s8, 1
    %p65 = por %p63, %p64
    %p66 = scmp.ne.s32.totalorder %s58, %s61
    %p67 = scmp.eq.s32.totalorder %s8, 0
    %p68 = por %p66, %p67
    %p69 = scmp.ne.s32.totalorder %s58, %s61
    %p70 = scmp.eq.s32.totalorder %s13, 1
    %p71 = por %p69, %p70
    %p72 = scmp.ne.s32.totalorder %s61, %s62
    %p73 = scmp.eq.s32.totalorder %s13, 0
    %p74 = por %p72, %p73
    %p75 = scmp.ne.s32.totalorder %s61, %s62
    %p76 = scmp.eq.s32.totalorder %s14, 1
    %p77 = por %p75, %p76
    %p79 = scmp.ne.s32.totalorder %s62, %s78
    %p80 = scmp.eq.s32.totalorder %s14, 0
    %p81 = por %p79, %p80
    %s82 = ssub.s32 %s15, %s27
    %p83 = scmp.eq.s32.totalorder %s82, 0
    %s85 = sadd.s32 %s84, 1
    %s86 = scalar_select %p83, %s84, %s85
    %p89 = pneg %p83
    %p90 = scmp.eq.s32.totalorder %s8, 1
    %p91 = por %p89, %p90
    %p92 = scmp.ne.s32.totalorder %s84, %s87
    %p93 = scmp.eq.s32.totalorder %s8, 0
    %p94 = por %p92, %p93
    %p95 = scmp.ne.s32.totalorder %s84, %s87
    %p96 = scmp.eq.s32.totalorder %s13, 1
    %p97 = por %p95, %p96
    %p98 = scmp.ne.s32.totalorder %s87, %s88
    %p99 = scmp.eq.s32.totalorder %s13, 0
    %p100 = por %p98, %p99
    %p101 = scmp.ne.s32.totalorder %s87, %s88
    %p102 = scmp.eq.s32.totalorder %s14, 1
    %p103 = por %p101, %p102
    %p105 = scmp.ne.s32.totalorder %s88, %s104
    %p106 = scmp.eq.s32.totalorder %s14, 0
    %p107 = por %p105, %p106
    %p108 = scmp.le.s32.totalorder 1, %s8
    %p109 = scmp.lt.s32.totalorder %s8, 3
    %p110 = pnand %p108, %p109
    %p111 = pneg %p110
    // Predicated region
    $region9: #{_encode_codes.2} parent=5 // pred_check
      _
    $region10: #{_encode_codes.2} parent=5 // pred_check_branch
      %113 = sbr.rel (%p110) target = $region12
    $region11: #{_encode_codes.2} parent=5 // pred_region
      %s114 = ssub.s32 %s8, 1
    $region12: #{_encode_codes.2} parent=5 // pred_fallthru
      _
    %p115 = scmp.lt.s32.totalorder %s8, 2
    // Predicated region
    $region13: #{_encode_codes.2} parent=5 // pred_check
      %p116 = pneg %p115
    $region14: #{_encode_codes.2} parent=5 // pred_check_branch
      %118 = sbr.rel (%p116) target = $region16
    $region15: #{_encode_codes.2} parent=5 // pred_region
      // Predicated region
      $region17: #{_encode_codes.2} parent=15 // pred_check
        %p119 = pneg %p40
      $region18: #{_encode_codes.2} parent=15 // pred_check_branch
        %121 = sbr.rel (%p119) target = $region20
      $region19: #{_encode_codes.2} parent=15 // pred_region
        %s122 = smul.u32 4, %s16
        %p123 = scmp.lt.s32.totalorder %s122, 7
        %s124 = scalar_select %p123, %s122, 7
        %s125 = smul.addr %s124, 8
        %s126 = scalar_lea.vmem %s0, %s125
        %s127 = smul.u32 4, %s16
      $region20: #{_encode_codes.2} parent=15 // pred_fallthru
        _
      // Predicated region
      $region21: #{_encode_codes.2} parent=15 // pred_check
        %p128 = pneg %p68
      $region22: #{_encode_codes.2} parent=15 // pred_check_branch
        %130 = sbr.rel (%p128) target = $region24
      $region23: #{_encode_codes.2} parent=15 // pred_region
        %s131 = smul.u32 4, %s16
        %p132 = scmp.lt.s32.totalorder %s15, 0
        %s133 = scalar_select %p132, %s15, 0
        %p134 = scmp.lt.s32.totalorder %s131, 7
        %s135 = scalar_select %p134, %s131, 7
        %s136 = smul.addr %s133, 8
        %s137 = sadd.s32 %s135, %s136
        %s138 = smul.addr %s137, 8
        %s139 = scalar_lea.vmem %s1, %s138
        %s140 = smul.u32 4, %s16
      $region24: #{_encode_codes.2} parent=15 // pred_fallthru
        _
    $region16: #{_encode_codes.2} parent=5 // pred_fallthru
      _
    %p141 = scmp.le.s32.totalorder 1, %s8
    %p142 = scmp.lt.s32.totalorder %s8, 3
    %p143 = pnand %p141, %p142
    %p144 = pneg %p143
    // Predicated region
    $region25: #{_encode_codes.2} parent=5 // pred_check
      _
    $region26: #{_encode_codes.2} parent=5 // pred_check_branch
      %146 = sbr.rel (%p143) target = $region28
    $region27: #{_encode_codes.2} parent=5 // pred_region
      %s147 = ssub.s32 %s8, 1
      %s148 = smul.u32 4, %s18
      %p149 = scmp.lt.s32.totalorder %s148, 7
      %s150 = scalar_select %p149, %s148, 7
      %s151 = smul.addr %s150, 8
      %s152 = scalar_lea.vmem %s0, %s151
      %p153 = pneg %p46
      %p154 = pneg %p43
      %s155 = smul.u32 4, %s18
      %p156 = scmp.lt.s32.totalorder %s17, 0
      %s157 = scalar_select %p156, %s17, 0
      %p158 = scmp.lt.s32.totalorder %s155, 7
      %s159 = scalar_select %p158, %s155, 7
      %s160 = smul.addr %s157, 8
      %s161 = sadd.s32 %s159, %s160
      %s162 = smul.addr %s161, 8
      %s163 = scalar_lea.vmem %s1, %s162
      %p164 = pneg %p74
      %p165 = pneg %p71
      %p166 = pneg %p100
      %p167 = pneg %p97
      %p168 = scmp.lt.s32.totalorder %s17, 0
      %s169 = scalar_select %p168, %s17, 0
      %s170 = smul.addr %s169, 8
      %s171 = scalar_lea.vmem %s2, %s170
      %s172 = smul.u32 4, %s18
      %p173 = scmp.lt.s32.totalorder %s172, 7
      %s174 = scalar_select %p173, %s172, 7
      %s175 = smul.addr %s174, 8
      %s176 = scalar_lea.vmem %s0, %s175
      %s177 = smul.u32 4, %s18
      %s178 = smul.u32 4, %s18
      %p179 = scmp.lt.s32.totalorder %s17, 0
      %s180 = scalar_select %p179, %s17, 0
      %p181 = scmp.lt.s32.totalorder %s178, 7
      %s182 = scalar_select %p181, %s178, 7
      %s183 = smul.addr %s180, 8
      %s184 = sadd.s32 %s182, %s183
      %s185 = smul.addr %s184, 8
      %s186 = scalar_lea.vmem %s1, %s185
      %s187 = smul.u32 4, %s18
      %p188 = scmp.lt.s32.totalorder %s17, 0
      %s189 = scalar_select %p188, %s17, 0
      %s190 = smul.addr %s189, 8
      %s191 = scalar_lea.vmem %s2, %s190
      %p192 = scmp.eq.s32.totalorder %s18, 0
      // Predicated region
      $region29: #{_encode_codes.2} parent=27 // pred_check
        %p193 = pneg %p192
      $region30: #{_encode_codes.2} parent=27 // pred_check_branch
        %195 = sbr.rel (%p193) target = $region32
      $region31: #{_encode_codes.2} parent=27 // pred_region
        %vm196 = vcmask 64512
        %197 = vst.msk [vmem:[%s191] sm:$0xff] %vm196, 0.0
      $region32: #{_encode_codes.2} parent=27 // pred_fallthru
        _
      %v198 = vld [vmem:[%s186] sm:$0xff]
      %v199 = vld [vmem:[%s186 + $0x8] sm:$0xff]
      %v200 = vld [vmem:[%s186 + $0x10] sm:$0xff]
      %v201 = vld [vmem:[%s186 + $0x18] sm:$0xff]
      %s202 = smul.u32 0, 4
      %s203 = smul.addr %s202, 8
      %s204 = scalar_lea.vmem %s176, %s203
      %v205 = vld [vmem:[%s204] sm:$0xff]
      %v206 = vld [vmem:[%s204 + $0x8] sm:$0xff]
      %v207 = vld [vmem:[%s204 + $0x10] sm:$0xff]
      %v208 = vld [vmem:[%s204 + $0x18] sm:$0xff]
      %v209 = vlaneseq
      %v210 = vshrl.u32 %v209, 7
      %v211 = vsub.s32 0, %v210
      %v212 = vrot.slane %v198, %v211
      %v213 = vlaneseq
      %v214 = vshrl.u32 %v213, 7
      %v215 = vsub.s32 0, %v214
      %v216 = vrot.slane %v199, %v215
      %v217 = vlaneseq
      %v218 = vshrl.u32 %v217, 7
      %v219 = vsub.s32 0, %v218
      %v220 = vrot.slane %v200, %v219
      %v221 = vlaneseq
      %v222 = vshrl.u32 %v221, 7
      %v223 = vsub.s32 0, %v222
      %v224 = vrot.slane %v201, %v223
      %vm225 = vcmp.ne.s32.totalorder %v205, %v212
      %vm226 = vcmp.ne.s32.totalorder %v206, %v216
      %vm227 = vcmp.ne.s32.totalorder %v207, %v220
      %vm228 = vcmp.ne.s32.totalorder %v208, %v224
      %v229 = vsel %vm225, 1, 0
      %v230 = vsel %vm226, 1, 0
      %v231 = vsel %vm227, 1, 0
      %v232 = vsel %vm228, 1, 0
      %v233 = vcvt.s32.f32 %v229
      %v234 = vcvt.s32.f32 %v230
      %v235 = vcvt.s32.f32 %v231
      %v236 = vcvt.s32.f32 %v232
      %v237 = vadd.f32 %v233, %v234
      %v238 = vadd.f32 %v237, %v235
      %v239 = vadd.f32 %v238, %v236
      %240 = vadd.xlane.f32.xlu0 %v239
      %v241 = vpop.xlane.xlu0 %240
      %v242 = vld [vmem:[%s191] sm:$0xff]
      %v243 = vadd.f32 %v242, %v241
      %vm244 = vcmask 7168
      %245 = vst.msk [vmem:[%s191] sm:$0xff] %vm244, %v243
      %v246 = vlaneseq
      %v247 = vshrl.u32 %v246, 7
      %v248 = vsub.s32 1, %v247
      %v249 = vrot.slane %v198, %v248
      %v250 = vlaneseq
      %v251 = vshrl.u32 %v250, 7
      %v252 = vsub.s32 1, %v251
      %v253 = vrot.slane %v199, %v252
      %v254 = vlaneseq
      %v255 = vshrl.u32 %v254, 7
      %v256 = vsub.s32 1, %v255
      %v257 = vrot.slane %v200, %v256
      %v258 = vlaneseq
      %v259 = vshrl.u32 %v258, 7
      %v260 = vsub.s32 1, %v259
      %v261 = vrot.slane %v201, %v260
      %vm262 = vcmp.ne.s32.totalorder %v205, %v249
      %vm263 = vcmp.ne.s32.totalorder %v206, %v253
      %vm264 = vcmp.ne.s32.totalorder %v207, %v257
      %vm265 = vcmp.ne.s32.totalorder %v208, %v261
      %v266 = vsel %vm262, 1, 0
      %v267 = vsel %vm263, 1, 0
      %v268 = vsel %vm264, 1, 0
      %v269 = vsel %vm265, 1, 0
      %v270 = vcvt.s32.f32 %v266
      %v271 = vcvt.s32.f32 %v267
      %v272 = vcvt.s32.f32 %v268
      %v273 = vcvt.s32.f32 %v269
      %v274 = vadd.f32 %v270, %v271
      %v275 = vadd.f32 %v274, %v272
      %v276 = vadd.f32 %v275, %v273
      %277 = vadd.xlane.f32.xlu0 %v276
      %v278 = vpop.xlane.xlu0 %277
      %v279 = vld [vmem:[%s191] sm:$0xff]
      %v280 = vadd.f32 %v279, %v278
      %vm281 = vcmask 15368
      %282 = vst.msk [vmem:[%s191] sm:$0xff] %vm281, %v280
      %v283 = vlaneseq
      %v284 = vshrl.u32 %v283, 7
      %v285 = vsub.s32 2, %v284
      %v286 = vrot.slane %v198, %v285
      %v287 = vlaneseq
      %v288 = vshrl.u32 %v287, 7
      %v289 = vsub.s32 2, %v288
      %v290 = vrot.slane %v199, %v289
      %v291 = vlaneseq
      %v292 = vshrl.u32 %v291, 7
      %v293 = vsub.s32 2, %v292
      %v294 = vrot.slane %v200, %v293
      %v295 = vlaneseq
      %v296 = vshrl.u32 %v295, 7
      %v297 = vsub.s32 2, %v296
      %v298 = vrot.slane %v201, %v297
      %vm299 = vcmp.ne.s32.totalorder %v205, %v286
      %vm300 = vcmp.ne.s32.totalorder %v206, %v290
      %vm301 = vcmp.ne.s32.totalorder %v207, %v294
      %vm302 = vcmp.ne.s32.totalorder %v208, %v298
      %v303 = vsel %vm299, 1, 0
      %v304 = vsel %vm300, 1, 0
      %v305 = vsel %vm301, 1, 0
      %v306 = vsel %vm302, 1, 0
      %v307 = vcvt.s32.f32 %v303
      %v308 = vcvt.s32.f32 %v304
      %v309 = vcvt.s32.f32 %v305
      %v310 = vcvt.s32.f32 %v306
      %v311 = vadd.f32 %v307, %v308
      %v312 = vadd.f32 %v311, %v309
      %v313 = vadd.f32 %v312, %v310
      %314 = vadd.xlane.f32.xlu0 %v313
      %v315 = vpop.xlane.xlu0 %314
      %v316 = vld [vmem:[%s191] sm:$0xff]
      %v317 = vadd.f32 %v316, %v315
      %vm318 = vcmask 23568
      %319 = vst.msk [vmem:[%s191] sm:$0xff] %vm318, %v317
      %v320 = vlaneseq
      %v321 = vshrl.u32 %v320, 7
      %v322 = vsub.s32 3, %v321
      %v323 = vrot.slane %v198, %v322
      %v324 = vlaneseq
      %v325 = vshrl.u32 %v324, 7
      %v326 = vsub.s32 3, %v325
      %v327 = vrot.slane %v199, %v326
      %v328 = vlaneseq
      %v329 = vshrl.u32 %v328, 7
      %v330 = vsub.s32 3, %v329
      %v331 = vrot.slane %v200, %v330
      %v332 = vlaneseq
      %v333 = vshrl.u32 %v332, 7
      %v334 = vsub.s32 3, %v333
      %v335 = vrot.slane %v201, %v334
      %vm336 = vcmp.ne.s32.totalorder %v205, %v323
      %vm337 = vcmp.ne.s32.totalorder %v206, %v327
      %vm338 = vcmp.ne.s32.totalorder %v207, %v331
      %vm339 = vcmp.ne.s32.totalorder %v208, %v335
      %v340 = vsel %vm336, 1, 0
      %v341 = vsel %vm337, 1, 0
      %v342 = vsel %vm338, 1, 0
      %v343 = vsel %vm339, 1, 0
      %v344 = vcvt.s32.f32 %v340
      %v345 = vcvt.s32.f32 %v341
      %v346 = vcvt.s32.f32 %v342
      %v347 = vcvt.s32.f32 %v343
      %v348 = vadd.f32 %v344, %v345
      %v349 = vadd.f32 %v348, %v346
      %v350 = vadd.f32 %v349, %v347
      %351 = vadd.xlane.f32.xlu0 %v350
      %v352 = vpop.xlane.xlu0 %351
      %v353 = vld [vmem:[%s191] sm:$0xff]
      %v354 = vadd.f32 %v353, %v352
      %vm355 = vcmask 31768
      %356 = vst.msk [vmem:[%s191] sm:$0xff] %vm355, %v354
      %v357 = vlaneseq
      %v358 = vshrl.u32 %v357, 7
      %v359 = vsub.s32 4, %v358
      %v360 = vrot.slane %v198, %v359
      %v361 = vlaneseq
      %v362 = vshrl.u32 %v361, 7
      %v363 = vsub.s32 4, %v362
      %v364 = vrot.slane %v199, %v363
      %v365 = vlaneseq
      %v366 = vshrl.u32 %v365, 7
      %v367 = vsub.s32 4, %v366
      %v368 = vrot.slane %v200, %v367
      %v369 = vlaneseq
      %v370 = vshrl.u32 %v369, 7
      %v371 = vsub.s32 4, %v370
      %v372 = vrot.slane %v201, %v371
      %vm373 = vcmp.ne.s32.totalorder %v205, %v360
      %vm374 = vcmp.ne.s32.totalorder %v206, %v364
      %vm375 = vcmp.ne.s32.totalorder %v207, %v368
      %vm376 = vcmp.ne.s32.totalorder %v208, %v372
      %v377 = vsel %vm373, 1, 0
      %v378 = vsel %vm374, 1, 0
      %v379 = vsel %vm375, 1, 0
      %v380 = vsel %vm376, 1, 0
      %v381 = vcvt.s32.f32 %v377
      %v382 = vcvt.s32.f32 %v378
      %v383 = vcvt.s32.f32 %v379
      %v384 = vcvt.s32.f32 %v380
      %v385 = vadd.f32 %v381, %v382
      %v386 = vadd.f32 %v385, %v383
      %v387 = vadd.f32 %v386, %v384
      %388 = vadd.xlane.f32.xlu0 %v387
      %v389 = vpop.xlane.xlu0 %388
      %v390 = vld [vmem:[%s191] sm:$0xff]
      %v391 = vadd.f32 %v390, %v389
      %vm392 = vcmask 39968
      %393 = vst.msk [vmem:[%s191] sm:$0xff] %vm392, %v391
      %v394 = vlaneseq
      %v395 = vshrl.u32 %v394, 7
      %v396 = vsub.s32 5, %v395
      %v397 = vrot.slane %v198, %v396
      %v398 = vlaneseq
      %v399 = vshrl.u32 %v398, 7
      %v400 = vsub.s32 5, %v399
      %v401 = vrot.slane %v199, %v400
      %v402 = vlaneseq
      %v403 = vshrl.u32 %v402, 7
      %v404 = vsub.s32 5, %v403
      %v405 = vrot.slane %v200, %v404
      %v406 = vlaneseq
      %v407 = vshrl.u32 %v406, 7
      %v408 = vsub.s32 5, %v407
      %v409 = vrot.slane %v201, %v408
      %vm410 = vcmp.ne.s32.totalorder %v205, %v397
      %vm411 = vcmp.ne.s32.totalorder %v206, %v401
      %vm412 = vcmp.ne.s32.totalorder %v207, %v405
      %vm413 = vcmp.ne.s32.totalorder %v208, %v409
      %v414 = vsel %vm410, 1, 0
      %v415 = vsel %vm411, 1, 0
      %v416 = vsel %vm412, 1, 0
      %v417 = vsel %vm413, 1, 0
      %v418 = vcvt.s32.f32 %v414
      %v419 = vcvt.s32.f32 %v415
      %v420 = vcvt.s32.f32 %v416
      %v421 = vcvt.s32.f32 %v417
      %v422 = vadd.f32 %v418, %v419
      %v423 = vadd.f32 %v422, %v420
      %v424 = vadd.f32 %v423, %v421
      %425 = vadd.xlane.f32.xlu0 %v424
      %v426 = vpop.xlane.xlu0 %425
      %v427 = vld [vmem:[%s191] sm:$0xff]
      %v428 = vadd.f32 %v427, %v426
      %vm429 = vcmask 48168
      %430 = vst.msk [vmem:[%s191] sm:$0xff] %vm429, %v428
      %v431 = vlaneseq
      %v432 = vshrl.u32 %v431, 7
      %v433 = vsub.s32 6, %v432
      %v434 = vrot.slane %v198, %v433
      %v435 = vlaneseq
      %v436 = vshrl.u32 %v435, 7
      %v437 = vsub.s32 6, %v436
      %v438 = vrot.slane %v199, %v437
      %v439 = vlaneseq
      %v440 = vshrl.u32 %v439, 7
      %v441 = vsub.s32 6, %v440
      %v442 = vrot.slane %v200, %v441
      %v443 = vlaneseq
      %v444 = vshrl.u32 %v443, 7
      %v445 = vsub.s32 6, %v444
      %v446 = vrot.slane %v201, %v445
      %vm447 = vcmp.ne.s32.totalorder %v205, %v434
      %vm448 = vcmp.ne.s32.totalorder %v206, %v438
      %vm449 = vcmp.ne.s32.totalorder %v207, %v442
      %vm450 = vcmp.ne.s32.totalorder %v208, %v446
      %v451 = vsel %vm447, 1, 0
      %v452 = vsel %vm448, 1, 0
      %v453 = vsel %vm449, 1, 0
      %v454 = vsel %vm450, 1, 0
      %v455 = vcvt.s32.f32 %v451
      %v456 = vcvt.s32.f32 %v452
      %v457 = vcvt.s32.f32 %v453
      %v458 = vcvt.s32.f32 %v454
      %v459 = vadd.f32 %v455, %v456
      %v460 = vadd.f32 %v459, %v457
      %v461 = vadd.f32 %v460, %v458
      %462 = vadd.xlane.f32.xlu0 %v461
      %v463 = vpop.xlane.xlu0 %462
      %v464 = vld [vmem:[%s191] sm:$0xff]
      %v465 = vadd.f32 %v464, %v463
      %vm466 = vcmask 56368
      %467 = vst.msk [vmem:[%s191] sm:$0xff] %vm466, %v465
      %v468 = vlaneseq
      %v469 = vshrl.u32 %v468, 7
      %v470 = vsub.s32 7, %v469
      %v471 = vrot.slane %v198, %v470
      %v472 = vlaneseq
      %v473 = vshrl.u32 %v472, 7
      %v474 = vsub.s32 7, %v473
      %v475 = vrot.slane %v199, %v474
      %v476 = vlaneseq
      %v477 = vshrl.u32 %v476, 7
      %v478 = vsub.s32 7, %v477
      %v479 = vrot.slane %v200, %v478
      %v480 = vlaneseq
      %v481 = vshrl.u32 %v480, 7
      %v482 = vsub.s32 7, %v481
      %v483 = vrot.slane %v201, %v482
      %vm484 = vcmp.ne.s32.totalorder %v205, %v471
      %vm485 = vcmp.ne.s32.totalorder %v206, %v475
      %vm486 = vcmp.ne.s32.totalorder %v207, %v479
      %vm487 = vcmp.ne.s32.totalorder %v208, %v483
      %v488 = vsel %vm484, 1, 0
      %v489 = vsel %vm485, 1, 0
      %v490 = vsel %vm486, 1, 0
      %v491 = vsel %vm487, 1, 0
      %v492 = vcvt.s32.f32 %v488
      %v493 = vcvt.s32.f32 %v489
      %v494 = vcvt.s32.f32 %v490
      %v495 = vcvt.s32.f32 %v491
      %v496 = vadd.f32 %v492, %v493
      %v497 = vadd.f32 %v496, %v494
      %v498 = vadd.f32 %v497, %v495
      %499 = vadd.xlane.f32.xlu0 %v498
      %v500 = vpop.xlane.xlu0 %499
      %v501 = vld [vmem:[%s191] sm:$0xff]
      %v502 = vadd.f32 %v501, %v500
      %vm503 = vcmask 64568
      %504 = vst.msk [vmem:[%s191] sm:$0xff] %vm503, %v502
      %p505 = scmp.lt.s32.totalorder %s17, 0
      %s506 = scalar_select %p505, %s17, 0
      %s507 = smul.addr %s506, 8
      %s508 = scalar_lea.vmem %s2, %s507
      // Predicated region
      $region33: #{_encode_codes.2} parent=27 // pred_check
        %p509 = pneg %p97
      $region34: #{_encode_codes.2} parent=27 // pred_check_branch
        %511 = sbr.rel (%p509) target = $region36
      $region35: #{_encode_codes.2} parent=27 // pred_region
        _
      $region36: #{_encode_codes.2} parent=27 // pred_fallthru
        _
      // Predicated region
      $region37: #{_encode_codes.2} parent=27 // pred_check
        %p512 = pneg %p97
      $region38: #{_encode_codes.2} parent=27 // pred_check_branch
        %514 = sbr.rel (%p512) target = $region40
      $region39: #{_encode_codes.2} parent=27 // pred_region
        %p515 = scmp.lt.s32.totalorder %s17, 0
        %s516 = scalar_select %p515, %s17, 0
        %s517 = smul.addr %s516, 8
        %s518 = scalar_lea.vmem %s2, %s517
      $region40: #{_encode_codes.2} parent=27 // pred_fallthru
        _
    $region28: #{_encode_codes.2} parent=5 // pred_fallthru
      _
    %p519 = scmp.le.s32.totalorder 2, %s8
    // Predicated region
    $region41: #{_encode_codes.2} parent=5 // pred_check
      %p520 = pneg %p519
    $region42: #{_encode_codes.2} parent=5 // pred_check_branch
      %522 = sbr.rel (%p520) target = $region44
    $region43: #{_encode_codes.2} parent=5 // pred_region
      %s523 = ssub.s32 %s8, 2
    $region44: #{_encode_codes.2} parent=5 // pred_fallthru
      _
  $region6: #{_encode_codes.2} parent=0 // loop_footer
    %s12 = sadd.s32 1, %s8
  $region7: #{_encode_codes.2} parent=0 // loop_footer_branch
    %7 = sbr.rel target = $region3
  $region8: #{_encode_codes.2} parent=0 // loop_exit
    _

</llo_original>
